<compile_context>
chip_gen: v5e
topology: v5e:2x2
jax: 0.10.0
libtpu: 0.0.40
codegen_flags: <defaults>
</compile_context>

<pallas_src>
import jax
import jax.numpy as jnp
from jax import lax
from jax.experimental import pallas as pl
from jax.experimental.pallas import tpu as pltpu

LANES = 128
SUBLANES = 8
DEFAULT_TILE_ROWS = 8192          # 8192 x 128 x f32 = 4 MiB per input block


def _num_tensorcores() -> int:
    """2 TensorCores per chip on v7x / v4 (megacore), 1 on v5e / v6e."""
    try:
        kind = jax.devices()[0].device_kind.lower()
    except Exception:  # pragma: no cover - defensive
        return 1
    return 2 if ("v7" in kind or "tpu7" in kind or "v4" in kind) else 1


def _make_mape_kernel(*, rows, tile_rows, n_tiles, tiles_per_core, n_cores):
    """Build the streaming partial-sum kernel (static shape params baked in)."""
    ragged = (rows % tile_rows) != 0
    has_dup = (n_cores * tiles_per_core) != n_tiles
    need_edge = ragged or has_dup     # static Python bool

    def kernel(pred_ref, tgt_ref, acc_ref):
        i = pl.program_id(1)

        @pl.when(i == 0)
        def _():
            acc_ref[...] = jnp.zeros_like(acc_ref)

        tile_idx = pl.program_id(0) * tiles_per_core + i

        def accumulate(valid_rows):
            pred = pred_ref[...].astype(jnp.float32)   # upcast in-kernel
            tgt = tgt_ref[...].astype(jnp.float32)
            # reciprocal goes to the EUP slot, keeping the VALU path slack.
            err = jnp.abs(tgt - pred) * pl.reciprocal(tgt, approx=False)
            if valid_rows is not None:
                local_row = lax.broadcasted_iota(jnp.int32, err.shape, 0)
                err = jnp.where(local_row < valid_rows, err, 0.0)
            # Per-lane/per-sublane partial sums: tile_rows/8 vreg-wise adds
            # into the resident (1, 8, 128) accumulator -> pure VPU work.
            acc_ref[...] += jnp.sum(
                err.reshape(1, tile_rows // SUBLANES, SUBLANES, LANES), axis=1)

        if need_edge:
            # Hot path: every tile strictly before the last logical tile is
            # full and never duplicated -> unmasked.
            pl.when(tile_idx < n_tiles - 1)(lambda: accumulate(None))
            # Edge path: ragged last tile and clamped duplicate tiles share a
            # single masked branch; duplicates get valid_rows <= 0 so they
            # contribute exactly zero (never double counted).
            pl.when(tile_idx >= n_tiles - 1)(
                lambda: accumulate(rows - tile_idx * tile_rows))
        else:
            accumulate(None)

    return kernel


def mape(output: jax.Array, target, *,
         tile_rows: int = DEFAULT_TILE_ROWS,
         num_cores: int | None = None,
         small_n_threshold: int = 1 << 20) -> jax.Array:
    """Mean Absolute Percentage Error, computed with a Pallas TPU kernel."""
    output = jnp.asarray(output)
    target = jnp.asarray(target)    # mirrors the torch.FloatTensor(target) fallback
    assert output.shape == target.shape, "output/target shape mismatch"
    n = output.size

    # Small-n fast path: pallas_call fixed cost dominates for tiny tensors.
    if n < small_n_threshold:
        o32 = output.reshape(-1).astype(jnp.float32)
        t32 = target.reshape(-1).astype(jnp.float32)
        return jnp.mean(jnp.abs(t32 - o32) / t32) * 100.0

    pred_flat = output.reshape(-1)
    tgt_flat = target.reshape(-1)

    # Lane alignment: pad ONLY if n is not a multiple of 128 (or slab < 8 rows),
    # using pred == tgt == 1 so pads contribute zero error.  Lane-aligned
    # inputs (the common case) get a copy-free reshape — no O(n) jnp.pad.
    # TODO(synk): a manual-DMA tail would avoid the copy for misaligned n too.
    min_elems = SUBLANES * LANES
    if (n % LANES != 0) or (n < min_elems):
        padded = max(-(-n // LANES) * LANES, min_elems)
        pred_flat = jnp.pad(pred_flat, (0, padded - n), constant_values=1)
        tgt_flat = jnp.pad(tgt_flat, (0, padded - n), constant_values=1)

    rows = pred_flat.size // LANES          # >= 8
    pred2d = pred_flat.reshape(rows, LANES)
    tgt2d = tgt_flat.reshape(rows, LANES)

    # Row tile: multiple of 8, never larger than the slab.
    tile_rows = max(SUBLANES, (min(int(tile_rows), rows) // SUBLANES) * SUBLANES)

    n_tiles = -(-rows // tile_rows)                         # cdiv
    n_cores = num_cores if num_cores is not None else _num_tensorcores()
    n_cores = max(1, min(int(n_cores), n_tiles))
    tiles_per_core = -(-n_tiles // n_cores)

    kernel = _make_mape_kernel(rows=rows, tile_rows=tile_rows, n_tiles=n_tiles,
                               tiles_per_core=tiles_per_core, n_cores=n_cores)

    def in_map(c, i):
        # Overhanging duplicate tiles are clamped onto the last real tile;
        # the kernel's edge branch zeroes their contribution.
        return (jnp.minimum(c * tiles_per_core + i, n_tiles - 1), 0)

    # Double-buffered inputs + headroom; capped so it also fits v7x's
    # 64 MiB-per-TC VMEM (v5e/v6e have 128 MiB physical).
    block_bytes = tile_rows * LANES * (pred2d.dtype.itemsize + tgt2d.dtype.itemsize)
    vmem_limit = int(min(2 * block_bytes + (16 << 20), 48 << 20))

    partials = pl.pallas_call(
        kernel,
        out_shape=jax.ShapeDtypeStruct((n_cores, SUBLANES, LANES), jnp.float32),
        grid_spec=pl.GridSpec(
            grid=(n_cores, tiles_per_core),
            in_specs=[
                pl.BlockSpec((tile_rows, LANES), in_map),
                pl.BlockSpec((tile_rows, LANES), in_map),
            ],
            out_specs=pl.BlockSpec((1, SUBLANES, LANES), lambda c, i: (c, 0, 0)),
        ),
        compiler_params=pltpu.CompilerParams(
            dimension_semantics=("parallel", "arbitrary"),
            vmem_limit_bytes=vmem_limit,
        ),
    )(pred2d, tgt2d)

    # Single tiny cross-lane reduce + scale, done once outside the hot loop.
    return jnp.sum(partials) * (100.0 / n)


if __name__ == "__main__":
    key = jax.random.PRNGKey(0)
    k1, k2, k3, k4, k5, k6 = jax.random.split(key, 6)

    def ref_mape(o, t):
        return jnp.mean(jnp.abs(t - o) / t * 100.0)

    # 1) Lane-aligned small tensor (n = 2048): single-tile Pallas path
    #    (small_n_threshold=0 forces the kernel even at small shapes).
    shape1 = (2, 4, 16, 16)
    out1 = jax.random.normal(k1, shape1, dtype=jnp.float32)
    tgt1 = jax.random.uniform(k2, shape1, dtype=jnp.float32, minval=0.5, maxval=2.0)
    loss1 = mape(out1, tgt1, small_n_threshold=0)
    jax.block_until_ready(loss1)
    assert jnp.allclose(loss1, ref_mape(out1, tgt1), rtol=1e-5, atol=1e-4), (
        loss1, ref_mape(out1, tgt1))

    # 2) Misaligned (3, 7, 11): exercises the lane-pad (value-1) path.
    shape2 = (3, 7, 11)
    out2 = jax.random.normal(k3, shape2, dtype=jnp.float32)
    tgt2 = jax.random.uniform(k4, shape2, dtype=jnp.float32, minval=0.5, maxval=2.0)
    loss2 = mape(out2, tgt2, small_n_threshold=0)
    jax.block_until_ready(loss2)
    assert jnp.allclose(loss2, ref_mape(out2, tgt2), rtol=1e-5, atol=1e-4), (
        loss2, ref_mape(out2, tgt2))

    # 3) (3, 7, 128) with a forced tiny tile and a 2-wide "parallel" axis:
    #    exercises multi-tile streaming, the ragged-last-tile mask branch and
    #    the clamped duplicate-tile gate.
    shape3 = (3, 7, 128)
    out3 = jax.random.normal(k5, shape3, dtype=jnp.float32)
    tgt3 = jax.random.uniform(k6, shape3, dtype=jnp.float32, minval=0.5, maxval=2.0)
    loss3 = mape(out3, tgt3, tile_rows=8, num_cores=2, small_n_threshold=0)
    jax.block_until_ready(loss3)
    assert jnp.allclose(loss3, ref_mape(out3, tgt3), rtol=1e-5, atol=1e-4), (
        loss3, ref_mape(out3, tgt3))

    # 4) Default call: small-n fast path (pure jnp).
    loss4 = mape(out1, tgt1)
    jax.block_until_ready(loss4)
    assert jnp.allclose(loss4, ref_mape(out1, tgt1), rtol=1e-5, atol=1e-4), (
        loss4, ref_mape(out1, tgt1))

    print("KERNEL_OK")
</pallas_src>

<mosaic_0001>
module attributes {stable_mosaic.version = 11 : i64} {
  func.func @kernel(%arg0: i32, %arg1: i32, %arg2: memref<16x128xf32, #tpu.memory_space<vmem>>, %arg3: memref<16x128xf32, #tpu.memory_space<vmem>>, %arg4: memref<1x8x128xf32, #tpu.memory_space<vmem>>) attributes {dimension_semantics = [#tpu.dimension_semantics<parallel>, #tpu.dimension_semantics<arbitrary>], iteration_bounds = array<i64: 1, 1>, scalar_prefetch = 0 : i64, scratch_operands = 0 : i64, tpu.core_type = #tpu.core_type<tc>, window_params = [{transform_indices = @transform_0, window_bounds = array<i64: 16, 128>}, {transform_indices = @transform_1, window_bounds = array<i64: 16, 128>}, {transform_indices = @transform_2, window_bounds = array<i64: 1, 8, 128>}]} {
    %c0_i32 = arith.constant 0 : i32
    %0 = arith.cmpi eq, %arg1, %c0_i32 : i32
    %1 = arith.extui %0 : i1 to i32
    %c0_i32_0 = arith.constant 0 : i32
    %2 = arith.cmpi ne, %1, %c0_i32_0 : i32
    scf.if %2 {
      %cst_10 = arith.constant 0.000000e+00 : f32
      %14 = vector.broadcast %cst_10 : f32 to vector<1x8x128xf32>
      %c0_11 = arith.constant 0 : index
      %c0_12 = arith.constant 0 : index
      %c0_13 = arith.constant 0 : index
      %15 = vector.load %arg4[%c0_11, %c0_12, %c0_13] : memref<1x8x128xf32, #tpu.memory_space<vmem>>, vector<1x8x128xf32>
      tpu.vector_store %arg4[%c0_11, %c0_12, %c0_13], %14 {strides = array<i32>} : memref<1x8x128xf32, #tpu.memory_space<vmem>>, vector<1x8x128xf32>,
    } else {
    }
    %c0 = arith.constant 0 : index
    %c0_1 = arith.constant 0 : index
    %3 = vector.load %arg2[%c0, %c0_1] : memref<16x128xf32, #tpu.memory_space<vmem>>, vector<16x128xf32>
    %c0_2 = arith.constant 0 : index
    %c0_3 = arith.constant 0 : index
    %4 = vector.load %arg3[%c0_2, %c0_3] : memref<16x128xf32, #tpu.memory_space<vmem>>, vector<16x128xf32>
    %5 = arith.subf %4, %3 : vector<16x128xf32>
    %6 = math.absf %5 : vector<16x128xf32>
    %7 = tpu.reciprocal %4 : vector<16x128xf32> -> vector<16x128xf32>
    %8 = arith.mulf %6, %7 : vector<16x128xf32>
    %c0_4 = arith.constant 0 : index
    %c0_5 = arith.constant 0 : index
    %c0_6 = arith.constant 0 : index
    %9 = vector.load %arg4[%c0_4, %c0_5, %c0_6] : memref<1x8x128xf32, #tpu.memory_space<vmem>>, vector<1x8x128xf32>
    %10 = vector.shape_cast %8 : vector<16x128xf32> to vector<1x2x8x128xf32>
    %cst = arith.constant dense<0.000000e+00> : vector<1x8x128xf32>
    %11 = vector.multi_reduction <add>, %10, %cst [1] : vector<1x2x8x128xf32> to vector<1x8x128xf32>
    %12 = arith.addf %9, %11 : vector<1x8x128xf32>
    %c0_7 = arith.constant 0 : index
    %c0_8 = arith.constant 0 : index
    %c0_9 = arith.constant 0 : index
    %13 = vector.load %arg4[%c0_7, %c0_8, %c0_9] : memref<1x8x128xf32, #tpu.memory_space<vmem>>, vector<1x8x128xf32>
    tpu.vector_store %arg4[%c0_7, %c0_8, %c0_9], %12 {strides = array<i32>} : memref<1x8x128xf32, #tpu.memory_space<vmem>>, vector<1x8x128xf32>,
    return
  }
  func.func @transform_0(%arg0: i32, %arg1: i32) -> (i32, i32) {
    %c1_i32 = arith.constant 1 : i32
    %0 = arith.muli %arg0, %c1_i32 : i32
    %1 = arith.addi %0, %arg1 : i32
    %c0_i32 = arith.constant 0 : i32
    %2 = arith.minsi %1, %c0_i32 : i32
    %c0_i32_0 = arith.constant 0 : i32
    %c0_i32_1 = arith.constant 0 : i32
    return %2, %c0_i32_0 : i32, i32
  }
  func.func @transform_1(%arg0: i32, %arg1: i32) -> (i32, i32) {
    %c1_i32 = arith.constant 1 : i32
    %0 = arith.muli %arg0, %c1_i32 : i32
    %1 = arith.addi %0, %arg1 : i32
    %c0_i32 = arith.constant 0 : i32
    %2 = arith.minsi %1, %c0_i32 : i32
    %c0_i32_0 = arith.constant 0 : i32
    %c0_i32_1 = arith.constant 0 : i32
    return %2, %c0_i32_0 : i32, i32
  }
  func.func @transform_2(%arg0: i32, %arg1: i32) -> (i32, i32, i32) {
    %c0_i32 = arith.constant 0 : i32
    %c0_i32_0 = arith.constant 0 : i32
    %c0_i32_1 = arith.constant 0 : i32
    return %arg0, %c0_i32, %c0_i32_0 : i32, i32, i32
  }
}

</mosaic_0001>

<llo_original>
// kernel: tpu_custom_call.1
$region0: #{tpu_custom_call.1}
  #allocation0 [shape = 'u32[]', space=smem, size = 0x4, offset = 0x4, fixed_abs, tag = 'smem constant byte address 0x4 - core index']
  #allocation1 [shape = 'u32[72,128]{1,0:T(1,128)}', space=vmem, size = 0x9000, scoped, tag = 'internal scratch']
  %s0 = inlined_call_operand.hbm [shape: f32[16,128], index: 0, kind: input, shape index: {}]
  %s1 = inlined_call_operand.hbm [shape: f32[16,128], index: 1, kind: input, shape index: {}]
  %s2 = inlined_call_operand.hbm [shape: f32[1,8,128], index: 2, kind: output, shape index: {}]
  %s3 = sld [smem:[#allocation0]]
  $region30: #{tpu_custom_call.1} parent=0
    _
  %s5 = ssub.s32 1, %s3
  %s6 = scalar_select 0, %s5, %s3
  $region1: #{tpu_custom_call.1} parent=0
    #allocation2 [shape = 'u8[8192]{0}', space=vmem, size = 0x2000, scoped, tag = 'input window, operand 0, single buffered']
    #allocation3 [shape = 's32[1]{0}', space=sflag, size = 0x4, scoped, tag = 'scoped memory for tpu_custom_call.1']
    #allocation4 [shape = 's32[1]{0}', space=sflag, size = 0x4, scoped, tag = 'scoped memory for tpu_custom_call.1']
    #allocation5 [shape = 'u8[8192]{0}', space=vmem, size = 0x2000, scoped, tag = 'input window, operand 1, single buffered']
    #allocation6 [shape = 's32[1]{0}', space=sflag, size = 0x4, scoped, tag = 'scoped memory for tpu_custom_call.1']
    #allocation7 [shape = 'u8[4096]{0}', space=vmem, size = 0x1000, scoped, tag = 'output window, operand 0, single buffered']
    %7 = vsyncpa [#allocation3], 0
    %8 = vsyncpa [#allocation6], 0
    %9 = vsyncpa [#allocation4], 0
    // Predicated region
    $region2: #{tpu_custom_call.1} parent=1 // pred_check
      _
    $region3: #{tpu_custom_call.1} parent=1 // pred_check_branch
      %11 = sbr.rel (0) target = $region5
    $region4: #{tpu_custom_call.1} parent=1 // pred_region
      %s12 = sadd.s32 0, 0
      %p13 = scmp.lt.s32.totalorder %s12, 0
      %s14 = scalar_select %p13, %s12, 0
      %s15 = smul.u32 2, %s14
      %17 = vsyncadd [#allocation3], 0
      %s18 = smul.addr %s15, 8
      %s19 = scalar_lea.hbm %s0, %s18
      %s20 = sshll.u32 %s19, 4
      %s21 = int_to_ptr.hbm [resolvable:$true] %s20
      %s22 = sshll.u32 [#allocation2], 4
      %s23 = int_to_ptr.vmem [resolvable:$true] %s22
      %28 = dma.hbm_to_vmem [thread:$0]  %s21, 256, %s23, [#allocation3], 128, 128, 8
    $region5: #{tpu_custom_call.1} parent=1 // pred_fallthru
      _
    // Predicated region
    $region6: #{tpu_custom_call.1} parent=1 // pred_check
      _
    $region7: #{tpu_custom_call.1} parent=1 // pred_check_branch
      %30 = sbr.rel (0) target = $region9
    $region8: #{tpu_custom_call.1} parent=1 // pred_region
      %s31 = sadd.s32 0, 0
      %p32 = scmp.lt.s32.totalorder %s31, 0
      %s33 = scalar_select %p32, %s31, 0
      %s34 = smul.u32 2, %s33
      %36 = vsyncadd [#allocation6], 0
      %s37 = smul.addr %s34, 8
      %s38 = scalar_lea.hbm %s1, %s37
      %s39 = sshll.u32 %s38, 4
      %s40 = int_to_ptr.hbm [resolvable:$true] %s39
      %s41 = sshll.u32 [#allocation5], 4
      %s42 = int_to_ptr.vmem [resolvable:$true] %s41
      %47 = dma.hbm_to_vmem [thread:$0]  %s40, 256, %s42, [#allocation6], 128, 128, 8
    $region9: #{tpu_custom_call.1} parent=1 // pred_fallthru
      _
    // Predicated region
    $region10: #{tpu_custom_call.1} parent=1 // pred_check
      _
    $region11: #{tpu_custom_call.1} parent=1 // pred_check_branch
      %49 = sbr.rel (0) target = $region13
    $region12: #{tpu_custom_call.1} parent=1 // pred_region
      %51 = dma.done [#allocation3], 256
    $region13: #{tpu_custom_call.1} parent=1 // pred_fallthru
      _
    // Predicated region
    $region14: #{tpu_custom_call.1} parent=1 // pred_check
      _
    $region15: #{tpu_custom_call.1} parent=1 // pred_check_branch
      %53 = sbr.rel (0) target = $region17
    $region16: #{tpu_custom_call.1} parent=1 // pred_region
      %55 = dma.done [#allocation6], 256
    $region17: #{tpu_custom_call.1} parent=1 // pred_fallthru
      _
    %s56 = sadd.s32 0, 0
    %p57 = scmp.lt.s32.totalorder %s56, 0
    %s58 = scalar_select %p57, %s56, 0
    %s59 = smul.u32 2, %s58
    %s60 = sadd.s32 0, 0
    %p61 = scmp.lt.s32.totalorder %s60, 0
    %s62 = scalar_select %p61, %s60, 0
    %s63 = smul.u32 2, %s62
    %p64 = scmp.eq.s32.totalorder 0, 0
    // Predicated region
    $region18: #{tpu_custom_call.1} parent=1 // pred_check
      %p65 = pneg %p64
    $region19: #{tpu_custom_call.1} parent=1 // pred_check_branch
      %67 = sbr.rel (%p65) target = $region21
    $region20: #{tpu_custom_call.1} parent=1 // pred_region
      %68 = vst [vmem:[#allocation7] sm:$0xff] 0.0
    $region21: #{tpu_custom_call.1} parent=1 // pred_fallthru
      _
    %v69 = vld [vmem:[#allocation2] sm:$0xff]
    %v70 = vld [vmem:[#allocation2 + $0x8] sm:$0xff]
    %v71 = vld [vmem:[#allocation5] sm:$0xff]
    %v72 = vld [vmem:[#allocation5 + $0x8] sm:$0xff]
    %v73 = vsub.f32 %v71, %v69
    %v74 = vsub.f32 %v72, %v70
    %v75 = vand.u32 2147483647, %v73
    %v76 = vand.u32 2147483647, %v74
    %v77 = vrcp.pop %v71
    %v78 = vmul.f32 %v71, %v77
    %v79 = vsub.f32 1.0, %v78
    %v80 = vmul.f32 %v77, %v79
    %v81 = vadd.f32 %v77, %v80
    %vm82 = vweird.f32 %v71
    %vm83 = vweird.f32 %v77
    %vm84 = vmor %vm82, %vm83
    %v85 = vsel %vm84, %v77, %v81
    %v86 = vand.u32 2147483647, %v71
    %vm87 = vcmp.eq.f32.partialorder %v86, 8.507059e+37
    %v88 = vand.u32 %v71, 2147483648
    %v89 = vor.u32 1.1754944e-38, %v88
    %v90 = vsel %vm87, %v89, %v85
    %v91 = vrcp.pop %v72
    %v92 = vmul.f32 %v72, %v91
    %v93 = vsub.f32 1.0, %v92
    %v94 = vmul.f32 %v91, %v93
    %v95 = vadd.f32 %v91, %v94
    %vm96 = vweird.f32 %v72
    %vm97 = vweird.f32 %v91
    %vm98 = vmor %vm96, %vm97
    %v99 = vsel %vm98, %v91, %v95
    %v100 = vand.u32 2147483647, %v72
    %vm101 = vcmp.eq.f32.partialorder %v100, 8.507059e+37
    %v102 = vand.u32 %v72, 2147483648
    %v103 = vor.u32 1.1754944e-38, %v102
    %v104 = vsel %vm101, %v103, %v99
    %v105 = vmul.f32 %v75, %v90
    %v106 = vmul.f32 %v76, %v104
    %v107 = vld [vmem:[#allocation7] sm:$0xff]
    %v108 = vadd.f32 %v105, %v106
    %v109 = vadd.f32 %v107, %v108
    %110 = vst [vmem:[#allocation7] sm:$0xff] %v109
    // Predicated region
    $region22: #{tpu_custom_call.1} parent=1 // pred_check
      _
    $region23: #{tpu_custom_call.1} parent=1 // pred_check_branch
      %112 = sbr.rel (0) target = $region25
    $region24: #{tpu_custom_call.1} parent=1 // pred_region
      %114 = vsyncadd [#allocation4], 0
      %s116 = sshll.u32 [#allocation7], 4
      %s117 = int_to_ptr.vmem [resolvable:$true] %s116
      %s118 = sshll.u32 %s2, 4
      %s119 = int_to_ptr.hbm [resolvable:$true] %s118
      %121 = dma.vmem_to_hbm [thread:$0]  %s117, 128, %s119, [#allocation4]
    $region25: #{tpu_custom_call.1} parent=1 // pred_fallthru
      _
    // Predicated region
    $region26: #{tpu_custom_call.1} parent=1 // pred_check
      _
    $region27: #{tpu_custom_call.1} parent=1 // pred_check_branch
      %123 = sbr.rel (0) target = $region29
    $region28: #{tpu_custom_call.1} parent=1 // pred_region
      %125 = dma.done [#allocation4], 128
    $region29: #{tpu_custom_call.1} parent=1 // pred_fallthru
      _
    %126 = vsyncpa [#allocation3], 1
    %127 = vsyncpa [#allocation6], 1
    %128 = vsyncpa [#allocation4], 1

</llo_original>
